<compile_context>
chip_gen: v6e
topology: v6e:2x2x1
jax: 0.10.0
libtpu: 0.0.40
codegen_flags: <defaults>
</compile_context>

<pallas_src>
import jax
import jax.numpy as jnp
from jax.experimental import pallas as pl
from jax.experimental.pallas import tpu as pltpu

EPS = 1e-5

# Packed parameter slab layout (f32, shape (32, 32); full-array VMEM block,
# constant across the grid so it stays resident after one small DMA):
#   slab[ 0: 8, 0: 5] = w1_eff (8, 5)   BatchNorm folded into Linear(5, 8)
#   slab[ 0: 8, 5   ] = b1_eff (8,)
#   slab[ 8:24, 0: 8] = w2     (16, 8)
#   slab[ 8:24, 8   ] = b2     (16,)
#   slab[24:28, 0:16] = w3     (4, 16)
#   slab[24:28, 16  ] = b3     (4,)
P_ROWS, P_COLS = 32, 32

# ~168 B/lane working set -> ~11 MB at 65536 lanes: fits every generation's
# scoped VMEM (v5e raised to 32 MiB below, v6e/v7x default 32 MiB).
DEFAULT_TILE_N = 65536
VMEM_LIMIT_BYTES = 32 * 1024 * 1024


def _dense_vpu(w, b, h):
    """Exact-f32 dense layer on the VPU (no MXU).

    w: (O, K) weights, b: (O, 1) bias, h: (K, TN) activations with the batch
    on the 128-lane axis.  out[o, :] = b[o] + sum_k w[o, k] * h[k, :].
    w[:, k:k+1] is a lane-broadcast (grid-step invariant, hoisted); h[k:k+1, :]
    is a sublane broadcast; the multiply/add stream on the 4 VALU slots.
    """
    _, kin = w.shape
    acc = w[:, 0:1] * h[0:1, :]
    for k in range(1, kin):
        acc = acc + w[:, k:k + 1] * h[k:k + 1, :]
    return acc + b


def _mlp_kernel(x_ref, p_ref, out_ref):
    """Lane-dense fused MLP (pure VPU).

    x_ref   : (5,  TN) f32   batch rows on lanes
    p_ref   : (32, 32) f32   packed parameters (resident)
    out_ref : (4,  TN) f32
    """
    x = x_ref[...]                                     # (5, TN)

    w1 = p_ref[0:8, 0:5]                               # (8, 5)  BN pre-folded
    b1 = p_ref[0:8, 5:6]                               # (8, 1)
    w2 = p_ref[8:24, 0:8]                              # (16, 8)
    b2 = p_ref[8:24, 8:9]                              # (16, 1)
    w3 = p_ref[24:28, 0:16]                            # (4, 16)
    b3 = p_ref[24:28, 16:17]                           # (4, 1)

    h1 = jnp.maximum(_dense_vpu(w1, b1, x), 0.0)       # (8,  TN)
    h2 = jnp.maximum(_dense_vpu(w2, b2, h1), 0.0)      # (16, TN)
    out = _dense_vpu(w3, b3, h2)                       # (4,  TN)
    out_ref[...] = out.astype(out_ref.dtype)           # lane-dense store


def _pack_params(params, mean, var):
    """Fold BN affine into Linear(5,8) and pack everything into one slab."""
    gamma, beta, w1, b1, w2, b2, w3, b3 = params
    scale = gamma * jax.lax.rsqrt(var + EPS)           # (5,)
    shift = beta - mean * scale                        # (5,)
    w1_eff = w1 * scale[None, :]                       # (8, 5)
    b1_eff = w1 @ shift + b1                           # (8,)

    slab = jnp.zeros((P_ROWS, P_COLS), jnp.float32)
    slab = slab.at[0:8, 0:5].set(w1_eff)
    slab = slab.at[0:8, 5].set(b1_eff)
    slab = slab.at[8:24, 0:8].set(w2)
    slab = slab.at[8:24, 8].set(b2)
    slab = slab.at[24:28, 0:16].set(w3)
    slab = slab.at[24:28, 16].set(b3)
    return slab


def _choose_tile_n(n, tile_n):
    """Lane-tile size: big (amortize per-step overhead) but with grid >= 2
    whenever the batch spans more than one 128-lane slab, so v7x's two
    TensorCores both get work from the 'parallel' grid axis."""
    n_lanes = pl.cdiv(n, 128) * 128
    if n_lanes <= 128:
        return 128
    half = pl.cdiv(n_lanes // 2, 128) * 128
    return max(128, min(int(tile_n), half))


def nvidia_fit_forward(x, params, tile_n=DEFAULT_TILE_N):
    """Forward pass. x: (N, 5) f32 -> (N, 4) f32."""
    n, f = x.shape
    assert f == 5, "NvidiaFit expects 5 input features"

    # Lane-dense layout: transpose ONCE, then compute BatchNorm1d training-mode
    # batch statistics from the transposed view (fusable with the transpose
    # producer, and never over pad columns).
    xt = jnp.asarray(x, jnp.float32).T                 # (5, N)
    mean = jnp.mean(xt, axis=1)                        # (5,)
    var = jnp.mean(jnp.square(xt - mean[:, None]), axis=1)   # biased variance
    slab = _pack_params(params, mean, var)

    tn = _choose_tile_n(n, tile_n)
    n_pad = pl.cdiv(n, tn) * tn
    xt = jnp.pad(xt, ((0, 0), (0, n_pad - n)))         # pad only the tail tile

    grid = (n_pad // tn,)
    out_t = pl.pallas_call(
        _mlp_kernel,
        out_shape=jax.ShapeDtypeStruct((4, n_pad), jnp.float32),
        grid_spec=pltpu.PrefetchScalarGridSpec(
            num_scalar_prefetch=0,
            grid=grid,
            in_specs=[
                # x tile; bump to pipeline_mode=pl.Buffered(3) if a bundle dump
                # shows exposed DMA (costs only ~20 B/lane of VMEM).
                pl.BlockSpec((5, tn), lambda i: (0, i)),
                pl.BlockSpec((P_ROWS, P_COLS), lambda i: (0, 0)),  # params slab
            ],
            out_specs=pl.BlockSpec((4, tn), lambda i: (0, i)),
        ),
        compiler_params=pltpu.CompilerParams(
            dimension_semantics=("parallel",),          # v7x: 2 TCs split rows
            vmem_limit_bytes=VMEM_LIMIT_BYTES,
        ),
        cost_estimate=pl.CostEstimate(
            flops=2 * (5 * 8 + 8 * 16 + 16 * 4) * n_pad,   # 464 flops/row
            transcendentals=0,
            bytes_accessed=(5 * 4 + 4 * 4) * n_pad,        # 36 B/row
        ),
    )(xt, slab)

    # Keep the module's (N, 4) interface; callers that can consume the
    # lane-dense (4, N) slab directly should skip this transpose.
    return out_t[:, :n].T


def init_params(key):
    """PyTorch-style defaults. Linear weights stored as (out, in)."""
    ks = jax.random.split(key, 6)

    def lin(kw, kb, fan_in, fan_out):
        bound = 1.0 / jnp.sqrt(jnp.float32(fan_in))
        w = jax.random.uniform(kw, (fan_out, fan_in), jnp.float32, -bound, bound)
        b = jax.random.uniform(kb, (fan_out,), jnp.float32, -bound, bound)
        return w, b

    gamma = jnp.ones((5,), jnp.float32)
    beta = jnp.zeros((5,), jnp.float32)
    w1, b1 = lin(ks[0], ks[1], 5, 8)
    w2, b2 = lin(ks[2], ks[3], 8, 16)
    w3, b3 = lin(ks[4], ks[5], 16, 4)
    return (gamma, beta, w1, b1, w2, b2, w3, b3)


def reference_forward(x, params):
    gamma, beta, w1, b1, w2, b2, w3, b3 = params
    mean = jnp.mean(x, axis=0)
    var = jnp.mean((x - mean) ** 2, axis=0)
    xn = (x - mean) / jnp.sqrt(var + EPS) * gamma + beta
    h1 = jnp.maximum(xn @ w1.T + b1, 0.0)
    h2 = jnp.maximum(h1 @ w2.T + b2, 0.0)
    return h2 @ w3.T + b3


if __name__ == "__main__":
    key = jax.random.PRNGKey(0)
    k_x1, k_x2, k_p = jax.random.split(key, 3)
    params = init_params(k_p)
    fwd = jax.jit(nvidia_fit_forward)

    # Case 1: small batch (single 128-lane grid step, padded tail).
    n1 = 64
    x1 = jax.random.normal(k_x1, (n1, 5), jnp.float32)
    out1 = jax.block_until_ready(fwd(x1, params))
    ref1 = reference_forward(x1, params)
    assert out1.shape == (n1, 4)
    assert jnp.allclose(out1, ref1, atol=1e-4, rtol=1e-4), "mismatch (small N)"

    # Case 2: multi-tile batch, not a multiple of the tile (grid >= 2,
    # zero-padded last tile) -- exercises the pipelined path.
    n2 = 1000
    x2 = jax.random.normal(k_x2, (n2, 5), jnp.float32)
    out2 = jax.block_until_ready(fwd(x2, params))
    ref2 = reference_forward(x2, params)
    assert out2.shape == (n2, 4)
    assert jnp.allclose(out2, ref2, atol=1e-4, rtol=1e-4), "mismatch (multi-tile N)"

    print("KERNEL_OK")
</pallas_src>

<mosaic_0001>
module attributes {stable_mosaic.version = 11 : i64} {
  func.func @_mlp_kernel(%arg0: i32, %arg1: memref<5x128xf32, #tpu.memory_space<vmem>>, %arg2: memref<32x32xf32, #tpu.memory_space<vmem>>, %arg3: memref<4x128xf32, #tpu.memory_space<vmem>>) attributes {dimension_semantics = [#tpu.dimension_semantics<parallel>], iteration_bounds = array<i64: 1>, scalar_prefetch = 0 : i64, scratch_operands = 0 : i64, tpu.core_type = #tpu.core_type<tc>, window_params = [{transform_indices = @transform_0, window_bounds = array<i64: 5, 128>}, {pipeline_mode = #tpu.pipeline_mode<synchronous>, transform_indices = @transform_1, window_bounds = array<i64: 32, 32>}, {transform_indices = @transform_2, window_bounds = array<i64: 4, 128>}]} {
    %c0 = arith.constant 0 : index
    %c0_0 = arith.constant 0 : index
    %0 = vector.load %arg1[%c0, %c0_0] : memref<5x128xf32, #tpu.memory_space<vmem>>, vector<5x128xf32>
    %c0_1 = arith.constant 0 : index
    %c0_2 = arith.constant 0 : index
    %1 = vector.load %arg2[%c0_1, %c0_2] : memref<32x32xf32, #tpu.memory_space<vmem>>, vector<8x5xf32>
    %c0_3 = arith.constant 0 : index
    %c5 = arith.constant 5 : index
    %2 = vector.load %arg2[%c0_3, %c5] : memref<32x32xf32, #tpu.memory_space<vmem>>, vector<8x1xf32>
    %c8 = arith.constant 8 : index
    %c0_4 = arith.constant 0 : index
    %3 = vector.load %arg2[%c8, %c0_4] : memref<32x32xf32, #tpu.memory_space<vmem>>, vector<16x8xf32>
    %c8_5 = arith.constant 8 : index
    %c8_6 = arith.constant 8 : index
    %4 = vector.load %arg2[%c8_5, %c8_6] : memref<32x32xf32, #tpu.memory_space<vmem>>, vector<16x1xf32>
    %c24 = arith.constant 24 : index
    %c0_7 = arith.constant 0 : index
    %5 = vector.load %arg2[%c24, %c0_7] : memref<32x32xf32, #tpu.memory_space<vmem>>, vector<4x16xf32>
    %c24_8 = arith.constant 24 : index
    %c16 = arith.constant 16 : index
    %6 = vector.load %arg2[%c24_8, %c16] : memref<32x32xf32, #tpu.memory_space<vmem>>, vector<4x1xf32>
    %7 = vector.extract_strided_slice %1 {offsets = [0, 0], sizes = [8, 1], strides = [1, 1]} : vector<8x5xf32> to vector<8x1xf32>
    %8 = vector.extract_strided_slice %0 {offsets = [0, 0], sizes = [1, 128], strides = [1, 1]} : vector<5x128xf32> to vector<1x128xf32>
    %9 = vector.broadcast %7 : vector<8x1xf32> to vector<8x128xf32>
    %10 = vector.broadcast %8 : vector<1x128xf32> to vector<8x128xf32>
    %11 = arith.mulf %9, %10 : vector<8x128xf32>
    %12 = vector.extract_strided_slice %1 {offsets = [0, 1], sizes = [8, 1], strides = [1, 1]} : vector<8x5xf32> to vector<8x1xf32>
    %13 = vector.extract_strided_slice %0 {offsets = [1, 0], sizes = [1, 128], strides = [1, 1]} : vector<5x128xf32> to vector<1x128xf32>
    %14 = vector.broadcast %12 : vector<8x1xf32> to vector<8x128xf32>
    %15 = vector.broadcast %13 : vector<1x128xf32> to vector<8x128xf32>
    %16 = arith.mulf %14, %15 : vector<8x128xf32>
    %17 = arith.addf %11, %16 : vector<8x128xf32>
    %18 = vector.extract_strided_slice %1 {offsets = [0, 2], sizes = [8, 1], strides = [1, 1]} : vector<8x5xf32> to vector<8x1xf32>
    %19 = vector.extract_strided_slice %0 {offsets = [2, 0], sizes = [1, 128], strides = [1, 1]} : vector<5x128xf32> to vector<1x128xf32>
    %20 = vector.broadcast %18 : vector<8x1xf32> to vector<8x128xf32>
    %21 = vector.broadcast %19 : vector<1x128xf32> to vector<8x128xf32>
    %22 = arith.mulf %20, %21 : vector<8x128xf32>
    %23 = arith.addf %17, %22 : vector<8x128xf32>
    %24 = vector.extract_strided_slice %1 {offsets = [0, 3], sizes = [8, 1], strides = [1, 1]} : vector<8x5xf32> to vector<8x1xf32>
    %25 = vector.extract_strided_slice %0 {offsets = [3, 0], sizes = [1, 128], strides = [1, 1]} : vector<5x128xf32> to vector<1x128xf32>
    %26 = vector.broadcast %24 : vector<8x1xf32> to vector<8x128xf32>
    %27 = vector.broadcast %25 : vector<1x128xf32> to vector<8x128xf32>
    %28 = arith.mulf %26, %27 : vector<8x128xf32>
    %29 = arith.addf %23, %28 : vector<8x128xf32>
    %30 = vector.extract_strided_slice %1 {offsets = [0, 4], sizes = [8, 1], strides = [1, 1]} : vector<8x5xf32> to vector<8x1xf32>
    %31 = vector.extract_strided_slice %0 {offsets = [4, 0], sizes = [1, 128], strides = [1, 1]} : vector<5x128xf32> to vector<1x128xf32>
    %32 = vector.broadcast %30 : vector<8x1xf32> to vector<8x128xf32>
    %33 = vector.broadcast %31 : vector<1x128xf32> to vector<8x128xf32>
    %34 = arith.mulf %32, %33 : vector<8x128xf32>
    %35 = arith.addf %29, %34 : vector<8x128xf32>
    %36 = vector.broadcast %2 : vector<8x1xf32> to vector<8x128xf32>
    %37 = arith.addf %35, %36 : vector<8x128xf32>
    %cst = arith.constant 0.000000e+00 : f32
    %38 = vector.broadcast %cst : f32 to vector<8x128xf32>
    %39 = arith.maximumf %37, %38 : vector<8x128xf32>
    %40 = vector.extract_strided_slice %3 {offsets = [0, 0], sizes = [16, 1], strides = [1, 1]} : vector<16x8xf32> to vector<16x1xf32>
    %41 = vector.extract_strided_slice %39 {offsets = [0, 0], sizes = [1, 128], strides = [1, 1]} : vector<8x128xf32> to vector<1x128xf32>
    %42 = vector.broadcast %40 : vector<16x1xf32> to vector<16x128xf32>
    %43 = vector.broadcast %41 : vector<1x128xf32> to vector<16x128xf32>
    %44 = arith.mulf %42, %43 : vector<16x128xf32>
    %45 = vector.extract_strided_slice %3 {offsets = [0, 1], sizes = [16, 1], strides = [1, 1]} : vector<16x8xf32> to vector<16x1xf32>
    %46 = vector.extract_strided_slice %39 {offsets = [1, 0], sizes = [1, 128], strides = [1, 1]} : vector<8x128xf32> to vector<1x128xf32>
    %47 = vector.broadcast %45 : vector<16x1xf32> to vector<16x128xf32>
    %48 = vector.broadcast %46 : vector<1x128xf32> to vector<16x128xf32>
    %49 = arith.mulf %47, %48 : vector<16x128xf32>
    %50 = arith.addf %44, %49 : vector<16x128xf32>
    %51 = vector.extract_strided_slice %3 {offsets = [0, 2], sizes = [16, 1], strides = [1, 1]} : vector<16x8xf32> to vector<16x1xf32>
    %52 = vector.extract_strided_slice %39 {offsets = [2, 0], sizes = [1, 128], strides = [1, 1]} : vector<8x128xf32> to vector<1x128xf32>
    %53 = vector.broadcast %51 : vector<16x1xf32> to vector<16x128xf32>
    %54 = vector.broadcast %52 : vector<1x128xf32> to vector<16x128xf32>
    %55 = arith.mulf %53, %54 : vector<16x128xf32>
    %56 = arith.addf %50, %55 : vector<16x128xf32>
    %57 = vector.extract_strided_slice %3 {offsets = [0, 3], sizes = [16, 1], strides = [1, 1]} : vector<16x8xf32> to vector<16x1xf32>
    %58 = vector.extract_strided_slice %39 {offsets = [3, 0], sizes = [1, 128], strides = [1, 1]} : vector<8x128xf32> to vector<1x128xf32>
    %59 = vector.broadcast %57 : vector<16x1xf32> to vector<16x128xf32>
    %60 = vector.broadcast %58 : vector<1x128xf32> to vector<16x128xf32>
    %61 = arith.mulf %59, %60 : vector<16x128xf32>
    %62 = arith.addf %56, %61 : vector<16x128xf32>
    %63 = vector.extract_strided_slice %3 {offsets = [0, 4], sizes = [16, 1], strides = [1, 1]} : vector<16x8xf32> to vector<16x1xf32>
    %64 = vector.extract_strided_slice %39 {offsets = [4, 0], sizes = [1, 128], strides = [1, 1]} : vector<8x128xf32> to vector<1x128xf32>
    %65 = vector.broadcast %63 : vector<16x1xf32> to vector<16x128xf32>
    %66 = vector.broadcast %64 : vector<1x128xf32> to vector<16x128xf32>
    %67 = arith.mulf %65, %66 : vector<16x128xf32>
    %68 = arith.addf %62, %67 : vector<16x128xf32>
    %69 = vector.extract_strided_slice %3 {offsets = [0, 5], sizes = [16, 1], strides = [1, 1]} : vector<16x8xf32> to vector<16x1xf32>
    %70 = vector.extract_strided_slice %39 {offsets = [5, 0], sizes = [1, 128], strides = [1, 1]} : vector<8x128xf32> to vector<1x128xf32>
    %71 = vector.broadcast %69 : vector<16x1xf32> to vector<16x128xf32>
    %72 = vector.broadcast %70 : vector<1x128xf32> to vector<16x128xf32>
    %73 = arith.mulf %71, %72 : vector<16x128xf32>
    %74 = arith.addf %68, %73 : vector<16x128xf32>
    %75 = vector.extract_strided_slice %3 {offsets = [0, 6], sizes = [16, 1], strides = [1, 1]} : vector<16x8xf32> to vector<16x1xf32>
    %76 = vector.extract_strided_slice %39 {offsets = [6, 0], sizes = [1, 128], strides = [1, 1]} : vector<8x128xf32> to vector<1x128xf32>
    %77 = vector.broadcast %75 : vector<16x1xf32> to vector<16x128xf32>
    %78 = vector.broadcast %76 : vector<1x128xf32> to vector<16x128xf32>
    %79 = arith.mulf %77, %78 : vector<16x128xf32>
    %80 = arith.addf %74, %79 : vector<16x128xf32>
    %81 = vector.extract_strided_slice %3 {offsets = [0, 7], sizes = [16, 1], strides = [1, 1]} : vector<16x8xf32> to vector<16x1xf32>
    %82 = vector.extract_strided_slice %39 {offsets = [7, 0], sizes = [1, 128], strides = [1, 1]} : vector<8x128xf32> to vector<1x128xf32>
    %83 = vector.broadcast %81 : vector<16x1xf32> to vector<16x128xf32>
    %84 = vector.broadcast %82 : vector<1x128xf32> to vector<16x128xf32>
    %85 = arith.mulf %83, %84 : vector<16x128xf32>
    %86 = arith.addf %80, %85 : vector<16x128xf32>
    %87 = vector.broadcast %4 : vector<16x1xf32> to vector<16x128xf32>
    %88 = arith.addf %86, %87 : vector<16x128xf32>
    %cst_9 = arith.constant 0.000000e+00 : f32
    %89 = vector.broadcast %cst_9 : f32 to vector<16x128xf32>
    %90 = arith.maximumf %88, %89 : vector<16x128xf32>
    %91 = vector.extract_strided_slice %5 {offsets = [0, 0], sizes = [4, 1], strides = [1, 1]} : vector<4x16xf32> to vector<4x1xf32>
    %92 = vector.extract_strided_slice %90 {offsets = [0, 0], sizes = [1, 128], strides = [1, 1]} : vector<16x128xf32> to vector<1x128xf32>
    %93 = vector.broadcast %91 : vector<4x1xf32> to vector<4x128xf32>
    %94 = vector.broadcast %92 : vector<1x128xf32> to vector<4x128xf32>
    %95 = arith.mulf %93, %94 : vector<4x128xf32>
    %96 = vector.extract_strided_slice %5 {offsets = [0, 1], sizes = [4, 1], strides = [1, 1]} : vector<4x16xf32> to vector<4x1xf32>
    %97 = vector.extract_strided_slice %90 {offsets = [1, 0], sizes = [1, 128], strides = [1, 1]} : vector<16x128xf32> to vector<1x128xf32>
    %98 = vector.broadcast %96 : vector<4x1xf32> to vector<4x128xf32>
    %99 = vector.broadcast %97 : vector<1x128xf32> to vector<4x128xf32>
    %100 = arith.mulf %98, %99 : vector<4x128xf32>
    %101 = arith.addf %95, %100 : vector<4x128xf32>
    %102 = vector.extract_strided_slice %5 {offsets = [0, 2], sizes = [4, 1], strides = [1, 1]} : vector<4x16xf32> to vector<4x1xf32>
    %103 = vector.extract_strided_slice %90 {offsets = [2, 0], sizes = [1, 128], strides = [1, 1]} : vector<16x128xf32> to vector<1x128xf32>
    %104 = vector.broadcast %102 : vector<4x1xf32> to vector<4x128xf32>
    %105 = vector.broadcast %103 : vector<1x128xf32> to vector<4x128xf32>
    %106 = arith.mulf %104, %105 : vector<4x128xf32>
    %107 = arith.addf %101, %106 : vector<4x128xf32>
    %108 = vector.extract_strided_slice %5 {offsets = [0, 3], sizes = [4, 1], strides = [1, 1]} : vector<4x16xf32> to vector<4x1xf32>
    %109 = vector.extract_strided_slice %90 {offsets = [3, 0], sizes = [1, 128], strides = [1, 1]} : vector<16x128xf32> to vector<1x128xf32>
    %110 = vector.broadcast %108 : vector<4x1xf32> to vector<4x128xf32>
    %111 = vector.broadcast %109 : vector<1x128xf32> to vector<4x128xf32>
    %112 = arith.mulf %110, %111 : vector<4x128xf32>
    %113 = arith.addf %107, %112 : vector<4x128xf32>
    %114 = vector.extract_strided_slice %5 {offsets = [0, 4], sizes = [4, 1], strides = [1, 1]} : vector<4x16xf32> to vector<4x1xf32>
    %115 = vector.extract_strided_slice %90 {offsets = [4, 0], sizes = [1, 128], strides = [1, 1]} : vector<16x128xf32> to vector<1x128xf32>
    %116 = vector.broadcast %114 : vector<4x1xf32> to vector<4x128xf32>
    %117 = vector.broadcast %115 : vector<1x128xf32> to vector<4x128xf32>
    %118 = arith.mulf %116, %117 : vector<4x128xf32>
    %119 = arith.addf %113, %118 : vector<4x128xf32>
    %120 = vector.extract_strided_slice %5 {offsets = [0, 5], sizes = [4, 1], strides = [1, 1]} : vector<4x16xf32> to vector<4x1xf32>
    %121 = vector.extract_strided_slice %90 {offsets = [5, 0], sizes = [1, 128], strides = [1, 1]} : vector<16x128xf32> to vector<1x128xf32>
    %122 = vector.broadcast %120 : vector<4x1xf32> to vector<4x128xf32>
    %123 = vector.broadcast %121 : vector<1x128xf32> to vector<4x128xf32>
    %124 = arith.mulf %122, %123 : vector<4x128xf32>
    %125 = arith.addf %119, %124 : vector<4x128xf32>
    %126 = vector.extract_strided_slice %5 {offsets = [0, 6], sizes = [4, 1], strides = [1, 1]} : vector<4x16xf32> to vector<4x1xf32>
    %127 = vector.extract_strided_slice %90 {offsets = [6, 0], sizes = [1, 128], strides = [1, 1]} : vector<16x128xf32> to vector<1x128xf32>
    %128 = vector.broadcast %126 : vector<4x1xf32> to vector<4x128xf32>
    %129 = vector.broadcast %127 : vector<1x128xf32> to vector<4x128xf32>
    %130 = arith.mulf %128, %129 : vector<4x128xf32>
    %131 = arith.addf %125, %130 : vector<4x128xf32>
    %132 = vector.extract_strided_slice %5 {offsets = [0, 7], sizes = [4, 1], strides = [1, 1]} : vector<4x16xf32> to vector<4x1xf32>
    %133 = vector.extract_strided_slice %90 {offsets = [7, 0], sizes = [1, 128], strides = [1, 1]} : vector<16x128xf32> to vector<1x128xf32>
    %134 = vector.broadcast %132 : vector<4x1xf32> to vector<4x128xf32>
    %135 = vector.broadcast %133 : vector<1x128xf32> to vector<4x128xf32>
    %136 = arith.mulf %134, %135 : vector<4x128xf32>
    %137 = arith.addf %131, %136 : vector<4x128xf32>
    %138 = vector.extract_strided_slice %5 {offsets = [0, 8], sizes = [4, 1], strides = [1, 1]} : vector<4x16xf32> to vector<4x1xf32>
    %139 = vector.extract_strided_slice %90 {offsets = [8, 0], sizes = [1, 128], strides = [1, 1]} : vector<16x128xf32> to vector<1x128xf32>
    %140 = vector.broadcast %138 : vector<4x1xf32> to vector<4x128xf32>
    %141 = vector.broadcast %139 : vector<1x128xf32> to vector<4x128xf32>
    %142 = arith.mulf %140, %141 : vector<4x128xf32>
    %143 = arith.addf %137, %142 : vector<4x128xf32>
    %144 = vector.extract_strided_slice %5 {offsets = [0, 9], sizes = [4, 1], strides = [1, 1]} : vector<4x16xf32> to vector<4x1xf32>
    %145 = vector.extract_strided_slice %90 {offsets = [9, 0], sizes = [1, 128], strides = [1, 1]} : vector<16x128xf32> to vector<1x128xf32>
    %146 = vector.broadcast %144 : vector<4x1xf32> to vector<4x128xf32>
    %147 = vector.broadcast %145 : vector<1x128xf32> to vector<4x128xf32>
    %148 = arith.mulf %146, %147 : vector<4x128xf32>
    %149 = arith.addf %143, %148 : vector<4x128xf32>
    %150 = vector.extract_strided_slice %5 {offsets = [0, 10], sizes = [4, 1], strides = [1, 1]} : vector<4x16xf32> to vector<4x1xf32>
    %151 = vector.extract_strided_slice %90 {offsets = [10, 0], sizes = [1, 128], strides = [1, 1]} : vector<16x128xf32> to vector<1x128xf32>
    %152 = vector.broadcast %150 : vector<4x1xf32> to vector<4x128xf32>
    %153 = vector.broadcast %151 : vector<1x128xf32> to vector<4x128xf32>
    %154 = arith.mulf %152, %153 : vector<4x128xf32>
    %155 = arith.addf %149, %154 : vector<4x128xf32>
    %156 = vector.extract_strided_slice %5 {offsets = [0, 11], sizes = [4, 1], strides = [1, 1]} : vector<4x16xf32> to vector<4x1xf32>
    %157 = vector.extract_strided_slice %90 {offsets = [11, 0], sizes = [1, 128], strides = [1, 1]} : vector<16x128xf32> to vector<1x128xf32>
    %158 = vector.broadcast %156 : vector<4x1xf32> to vector<4x128xf32>
    %159 = vector.broadcast %157 : vector<1x128xf32> to vector<4x128xf32>
    %160 = arith.mulf %158, %159 : vector<4x128xf32>
    %161 = arith.addf %155, %160 : vector<4x128xf32>
    %162 = vector.extract_strided_slice %5 {offsets = [0, 12], sizes = [4, 1], strides = [1, 1]} : vector<4x16xf32> to vector<4x1xf32>
    %163 = vector.extract_strided_slice %90 {offsets = [12, 0], sizes = [1, 128], strides = [1, 1]} : vector<16x128xf32> to vector<1x128xf32>
    %164 = vector.broadcast %162 : vector<4x1xf32> to vector<4x128xf32>
    %165 = vector.broadcast %163 : vector<1x128xf32> to vector<4x128xf32>
    %166 = arith.mulf %164, %165 : vector<4x128xf32>
    %167 = arith.addf %161, %166 : vector<4x128xf32>
    %168 = vector.extract_strided_slice %5 {offsets = [0, 13], sizes = [4, 1], strides = [1, 1]} : vector<4x16xf32> to vector<4x1xf32>
    %169 = vector.extract_strided_slice %90 {offsets = [13, 0], sizes = [1, 128], strides = [1, 1]} : vector<16x128xf32> to vector<1x128xf32>
    %170 = vector.broadcast %168 : vector<4x1xf32> to vector<4x128xf32>
    %171 = vector.broadcast %169 : vector<1x128xf32> to vector<4x128xf32>
    %172 = arith.mulf %170, %171 : vector<4x128xf32>
    %173 = arith.addf %167, %172 : vector<4x128xf32>
    %174 = vector.extract_strided_slice %5 {offsets = [0, 14], sizes = [4, 1], strides = [1, 1]} : vector<4x16xf32> to vector<4x1xf32>
    %175 = vector.extract_strided_slice %90 {offsets = [14, 0], sizes = [1, 128], strides = [1, 1]} : vector<16x128xf32> to vector<1x128xf32>
    %176 = vector.broadcast %174 : vector<4x1xf32> to vector<4x128xf32>
    %177 = vector.broadcast %175 : vector<1x128xf32> to vector<4x128xf32>
    %178 = arith.mulf %176, %177 : vector<4x128xf32>
    %179 = arith.addf %173, %178 : vector<4x128xf32>
    %180 = vector.extract_strided_slice %5 {offsets = [0, 15], sizes = [4, 1], strides = [1, 1]} : vector<4x16xf32> to vector<4x1xf32>
    %181 = vector.extract_strided_slice %90 {offsets = [15, 0], sizes = [1, 128], strides = [1, 1]} : vector<16x128xf32> to vector<1x128xf32>
    %182 = vector.broadcast %180 : vector<4x1xf32> to vector<4x128xf32>
    %183 = vector.broadcast %181 : vector<1x128xf32> to vector<4x128xf32>
    %184 = arith.mulf %182, %183 : vector<4x128xf32>
    %185 = arith.addf %179, %184 : vector<4x128xf32>
    %186 = vector.broadcast %6 : vector<4x1xf32> to vector<4x128xf32>
    %187 = arith.addf %185, %186 : vector<4x128xf32>
    %c0_10 = arith.constant 0 : index
    %c0_11 = arith.constant 0 : index
    %188 = vector.load %arg3[%c0_10, %c0_11] : memref<4x128xf32, #tpu.memory_space<vmem>>, vector<4x128xf32>
    tpu.vector_store %arg3[%c0_10, %c0_11], %187 {strides = array<i32>} : memref<4x128xf32, #tpu.memory_space<vmem>>, vector<4x128xf32>,
    return
  }
  func.func @transform_0(%arg0: i32) -> (i32, i32) {
    %c0_i32 = arith.constant 0 : i32
    %c0_i32_0 = arith.constant 0 : i32
    return %c0_i32, %arg0 : i32, i32
  }
  func.func @transform_1(%arg0: i32) -> (i32, i32) {
    %c0_i32 = arith.constant 0 : i32
    %c0_i32_0 = arith.constant 0 : i32
    %c0_i32_1 = arith.constant 0 : i32
    return %c0_i32, %c0_i32_0 : i32, i32
  }
  func.func @transform_2(%arg0: i32) -> (i32, i32) {
    %c0_i32 = arith.constant 0 : i32
    %c0_i32_0 = arith.constant 0 : i32
    return %c0_i32, %arg0 : i32, i32
  }
}

</mosaic_0001>

<llo_original>
// kernel: nvidia_fit_forward.1
$region0: #{nvidia_fit_forward.1}
  #allocation0 [shape = 'u32[]', space=smem, size = 0x4, offset = 0x4, fixed_abs, tag = 'smem constant byte address 0x4 - core index']
  #allocation1 [shape = 'u32[144,128]{1,0:T(1,128)}', space=vmem, size = 0x12000, scoped, tag = 'internal scratch']
  %s0 = inlined_call_operand.vmem [shape: f32[5,128], index: 0, kind: input, shape index: {}]
  %s1 = inlined_call_operand.vmem [shape: f32[32,32], index: 1, kind: input, shape index: {}]
  %s2 = inlined_call_operand.vmem [shape: f32[4,128], index: 2, kind: output, shape index: {}]
  %s3 = sld [smem:[#allocation0]]
  $region18: #{nvidia_fit_forward.1} parent=0
    _
  %s5 = ssub.s32 1, %s3
  %s6 = scalar_select 0, %s5, %s3
  // Predicated region
  $region2: #{nvidia_fit_forward.1} parent=0 // pred_check
    _
  $region3: #{nvidia_fit_forward.1} parent=0 // pred_check_branch
    %8 = sbr.rel (0) target = $region5
  $region4: #{nvidia_fit_forward.1} parent=0 // pred_region
    _
  $region5: #{nvidia_fit_forward.1} parent=0 // pred_fallthru
    _
  // Predicated region
  $region6: #{nvidia_fit_forward.1} parent=0 // pred_check
    _
  $region7: #{nvidia_fit_forward.1} parent=0 // pred_check_branch
    %10 = sbr.rel (0) target = $region9
  $region8: #{nvidia_fit_forward.1} parent=0 // pred_region
    _
  $region9: #{nvidia_fit_forward.1} parent=0 // pred_fallthru
    _
  %v11 = vld [vmem:[%s0] sm:$0x1f]
  %v12 = vld [vmem:[%s1] sm:$0xff]
  %v13 = vld [vmem:[%s1 + $0x8] sm:$0xff]
  %v14 = vld [vmem:[%s1 + $0x10] sm:$0xff]
  %v15 = vld [vmem:[%s1 + $0x18] sm:$0xf]
  %17 = vset.pattern.permute.xlu0 0
  %18 = vperm.xlu0 %17, %v12
  %v19 = vpop.permute.xlu0 %18
  %v21 = vlaneseq
  %v22 = vshrl.u32 %v21, 7
  %v23 = vsub.s32 0, %v22
  %v24 = vrot.slane %v11, %v23
  %v25 = vmul.f32 %v19, %v24
  %26 = vset.pattern.permute.xlu0 1
  %27 = vperm.xlu0 %26, %v12
  %v28 = vpop.permute.xlu0 %27
  %v30 = vlaneseq
  %v31 = vshrl.u32 %v30, 7
  %v32 = vsub.s32 1, %v31
  %v33 = vrot.slane %v11, %v32
  %v34 = vmul.f32 %v28, %v33
  %v35 = vadd.f32 %v25, %v34
  %36 = vset.pattern.permute.xlu0 2
  %37 = vperm.xlu0 %36, %v12
  %v38 = vpop.permute.xlu0 %37
  %v40 = vlaneseq
  %v41 = vshrl.u32 %v40, 7
  %v42 = vsub.s32 2, %v41
  %v43 = vrot.slane %v11, %v42
  %v44 = vmul.f32 %v38, %v43
  %v45 = vadd.f32 %v35, %v44
  %46 = vset.pattern.permute.xlu0 3
  %47 = vperm.xlu0 %46, %v12
  %v48 = vpop.permute.xlu0 %47
  %v50 = vlaneseq
  %v51 = vshrl.u32 %v50, 7
  %v52 = vsub.s32 3, %v51
  %v53 = vrot.slane %v11, %v52
  %v54 = vmul.f32 %v48, %v53
  %v55 = vadd.f32 %v45, %v54
  %56 = vset.pattern.permute.xlu0 4
  %57 = vperm.xlu0 %56, %v12
  %v58 = vpop.permute.xlu0 %57
  %v60 = vlaneseq
  %v61 = vshrl.u32 %v60, 7
  %v62 = vsub.s32 4, %v61
  %v63 = vrot.slane %v11, %v62
  %v64 = vmul.f32 %v58, %v63
  %v65 = vadd.f32 %v55, %v64
  %66 = vset.pattern.permute.xlu0 5
  %67 = vperm.xlu0 %66, %v12
  %v68 = vpop.permute.xlu0 %67
  %v70 = vadd.f32 %v65, %v68
  %v71 = vmax.f32 %v70, 0.0
  %73 = vset.pattern.permute.xlu0 0
  %74 = vperm.xlu0 %73, %v13
  %v75 = vpop.permute.xlu0 %74
  %78 = vset.pattern.permute.xlu0 0
  %79 = vperm.xlu0 %78, %v14
  %v80 = vpop.permute.xlu0 %79
  %v82 = vlaneseq
  %v83 = vshrl.u32 %v82, 7
  %v84 = vsub.s32 0, %v83
  %v85 = vrot.slane %v71, %v84
  %v86 = vmul.f32 %v75, %v85
  %v87 = vmul.f32 %v80, %v85
  %88 = vset.pattern.permute.xlu0 1
  %89 = vperm.xlu0 %88, %v13
  %v90 = vpop.permute.xlu0 %89
  %92 = vset.pattern.permute.xlu0 1
  %93 = vperm.xlu0 %92, %v14
  %v94 = vpop.permute.xlu0 %93
  %v96 = vlaneseq
  %v97 = vshrl.u32 %v96, 7
  %v98 = vsub.s32 1, %v97
  %v99 = vrot.slane %v71, %v98
  %v100 = vmul.f32 %v90, %v99
  %v101 = vmul.f32 %v94, %v99
  %v102 = vadd.f32 %v86, %v100
  %v103 = vadd.f32 %v87, %v101
  %104 = vset.pattern.permute.xlu0 2
  %105 = vperm.xlu0 %104, %v13
  %v106 = vpop.permute.xlu0 %105
  %108 = vset.pattern.permute.xlu0 2
  %109 = vperm.xlu0 %108, %v14
  %v110 = vpop.permute.xlu0 %109
  %v112 = vlaneseq
  %v113 = vshrl.u32 %v112, 7
  %v114 = vsub.s32 2, %v113
  %v115 = vrot.slane %v71, %v114
  %v116 = vmul.f32 %v106, %v115
  %v117 = vmul.f32 %v110, %v115
  %v118 = vadd.f32 %v102, %v116
  %v119 = vadd.f32 %v103, %v117
  %120 = vset.pattern.permute.xlu0 3
  %121 = vperm.xlu0 %120, %v13
  %v122 = vpop.permute.xlu0 %121
  %124 = vset.pattern.permute.xlu0 3
  %125 = vperm.xlu0 %124, %v14
  %v126 = vpop.permute.xlu0 %125
  %v128 = vlaneseq
  %v129 = vshrl.u32 %v128, 7
  %v130 = vsub.s32 3, %v129
  %v131 = vrot.slane %v71, %v130
  %v132 = vmul.f32 %v122, %v131
  %v133 = vmul.f32 %v126, %v131
  %v134 = vadd.f32 %v118, %v132
  %v135 = vadd.f32 %v119, %v133
  %136 = vset.pattern.permute.xlu0 4
  %137 = vperm.xlu0 %136, %v13
  %v138 = vpop.permute.xlu0 %137
  %140 = vset.pattern.permute.xlu0 4
  %141 = vperm.xlu0 %140, %v14
  %v142 = vpop.permute.xlu0 %141
  %v144 = vlaneseq
  %v145 = vshrl.u32 %v144, 7
  %v146 = vsub.s32 4, %v145
  %v147 = vrot.slane %v71, %v146
  %v148 = vmul.f32 %v138, %v147
  %v149 = vmul.f32 %v142, %v147
  %v150 = vadd.f32 %v134, %v148
  %v151 = vadd.f32 %v135, %v149
  %152 = vset.pattern.permute.xlu0 5
  %153 = vperm.xlu0 %152, %v13
  %v154 = vpop.permute.xlu0 %153
  %156 = vset.pattern.permute.xlu0 5
  %157 = vperm.xlu0 %156, %v14
  %v158 = vpop.permute.xlu0 %157
  %v160 = vlaneseq
  %v161 = vshrl.u32 %v160, 7
  %v162 = vsub.s32 5, %v161
  %v163 = vrot.slane %v71, %v162
  %v164 = vmul.f32 %v154, %v163
  %v165 = vmul.f32 %v158, %v163
  %v166 = vadd.f32 %v150, %v164
  %v167 = vadd.f32 %v151, %v165
  %168 = vset.pattern.permute.xlu0 6
  %169 = vperm.xlu0 %168, %v13
  %v170 = vpop.permute.xlu0 %169
  %172 = vset.pattern.permute.xlu0 6
  %173 = vperm.xlu0 %172, %v14
  %v174 = vpop.permute.xlu0 %173
  %v176 = vlaneseq
  %v177 = vshrl.u32 %v176, 7
  %v178 = vsub.s32 6, %v177
  %v179 = vrot.slane %v71, %v178
  %v180 = vmul.f32 %v170, %v179
  %v181 = vmul.f32 %v174, %v179
  %v182 = vadd.f32 %v166, %v180
  %v183 = vadd.f32 %v167, %v181
  %184 = vset.pattern.permute.xlu0 7
  %185 = vperm.xlu0 %184, %v13
  %v186 = vpop.permute.xlu0 %185
  %188 = vset.pattern.permute.xlu0 7
  %189 = vperm.xlu0 %188, %v14
  %v190 = vpop.permute.xlu0 %189
  %v192 = vlaneseq
  %v193 = vshrl.u32 %v192, 7
  %v194 = vsub.s32 7, %v193
  %v195 = vrot.slane %v71, %v194
  %v196 = vmul.f32 %v186, %v195
  %v197 = vmul.f32 %v190, %v195
  %v198 = vadd.f32 %v182, %v196
  %v199 = vadd.f32 %v183, %v197
  %200 = vset.pattern.permute.xlu0 8
  %201 = vperm.xlu0 %200, %v13
  %v202 = vpop.permute.xlu0 %201
  %204 = vset.pattern.permute.xlu0 8
  %205 = vperm.xlu0 %204, %v14
  %v206 = vpop.permute.xlu0 %205
  %v208 = vadd.f32 %v198, %v202
  %v209 = vadd.f32 %v199, %v206
  %v210 = vmax.f32 %v208, 0.0
  %v211 = vmax.f32 %v209, 0.0
  %213 = vset.pattern.permute.xlu0 0
  %214 = vperm.xlu0 %213, %v15
  %v215 = vpop.permute.xlu0 %214
  %v217 = vlaneseq
  %v218 = vshrl.u32 %v217, 7
  %v219 = vsub.s32 0, %v218
  %v220 = vrot.slane %v210, %v219
  %v221 = vmul.f32 %v215, %v220
  %222 = vset.pattern.permute.xlu0 1
  %223 = vperm.xlu0 %222, %v15
  %v224 = vpop.permute.xlu0 %223
  %v226 = vlaneseq
  %v227 = vshrl.u32 %v226, 7
  %v228 = vsub.s32 1, %v227
  %v229 = vrot.slane %v210, %v228
  %v230 = vmul.f32 %v224, %v229
  %v231 = vadd.f32 %v221, %v230
  %232 = vset.pattern.permute.xlu0 2
  %233 = vperm.xlu0 %232, %v15
  %v234 = vpop.permute.xlu0 %233
  %v236 = vlaneseq
  %v237 = vshrl.u32 %v236, 7
  %v238 = vsub.s32 2, %v237
  %v239 = vrot.slane %v210, %v238
  %v240 = vmul.f32 %v234, %v239
  %v241 = vadd.f32 %v231, %v240
  %242 = vset.pattern.permute.xlu0 3
  %243 = vperm.xlu0 %242, %v15
  %v244 = vpop.permute.xlu0 %243
  %v246 = vlaneseq
  %v247 = vshrl.u32 %v246, 7
  %v248 = vsub.s32 3, %v247
  %v249 = vrot.slane %v210, %v248
  %v250 = vmul.f32 %v244, %v249
  %v251 = vadd.f32 %v241, %v250
  %252 = vset.pattern.permute.xlu0 4
  %253 = vperm.xlu0 %252, %v15
  %v254 = vpop.permute.xlu0 %253
  %v256 = vlaneseq
  %v257 = vshrl.u32 %v256, 7
  %v258 = vsub.s32 4, %v257
  %v259 = vrot.slane %v210, %v258
  %v260 = vmul.f32 %v254, %v259
  %v261 = vadd.f32 %v251, %v260
  %262 = vset.pattern.permute.xlu0 5
  %263 = vperm.xlu0 %262, %v15
  %v264 = vpop.permute.xlu0 %263
  %v266 = vlaneseq
  %v267 = vshrl.u32 %v266, 7
  %v268 = vsub.s32 5, %v267
  %v269 = vrot.slane %v210, %v268
  %v270 = vmul.f32 %v264, %v269
  %v271 = vadd.f32 %v261, %v270
  %272 = vset.pattern.permute.xlu0 6
  %273 = vperm.xlu0 %272, %v15
  %v274 = vpop.permute.xlu0 %273
  %v276 = vlaneseq
  %v277 = vshrl.u32 %v276, 7
  %v278 = vsub.s32 6, %v277
  %v279 = vrot.slane %v210, %v278
  %v280 = vmul.f32 %v274, %v279
  %v281 = vadd.f32 %v271, %v280
  %282 = vset.pattern.permute.xlu0 7
  %283 = vperm.xlu0 %282, %v15
  %v284 = vpop.permute.xlu0 %283
  %v286 = vlaneseq
  %v287 = vshrl.u32 %v286, 7
  %v288 = vsub.s32 7, %v287
  %v289 = vrot.slane %v210, %v288
  %v290 = vmul.f32 %v284, %v289
  %v291 = vadd.f32 %v281, %v290
  %292 = vset.pattern.permute.xlu0 8
  %293 = vperm.xlu0 %292, %v15
  %v294 = vpop.permute.xlu0 %293
  %v296 = vlaneseq
  %v297 = vshrl.u32 %v296, 7
  %v298 = vsub.s32 0, %v297
  %v299 = vrot.slane %v211, %v298
  %v300 = vmul.f32 %v294, %v299
  %v301 = vadd.f32 %v291, %v300
  %302 = vset.pattern.permute.xlu0 9
  %303 = vperm.xlu0 %302, %v15
  %v304 = vpop.permute.xlu0 %303
  %v306 = vlaneseq
  %v307 = vshrl.u32 %v306, 7
  %v308 = vsub.s32 1, %v307
  %v309 = vrot.slane %v211, %v308
  %v310 = vmul.f32 %v304, %v309
  %v311 = vadd.f32 %v301, %v310
  %312 = vset.pattern.permute.xlu0 10
  %313 = vperm.xlu0 %312, %v15
  %v314 = vpop.permute.xlu0 %313
  %v316 = vlaneseq
  %v317 = vshrl.u32 %v316, 7
  %v318 = vsub.s32 2, %v317
  %v319 = vrot.slane %v211, %v318
  %v320 = vmul.f32 %v314, %v319
  %v321 = vadd.f32 %v311, %v320
  %322 = vset.pattern.permute.xlu0 11
  %323 = vperm.xlu0 %322, %v15
  %v324 = vpop.permute.xlu0 %323
  %v326 = vlaneseq
  %v327 = vshrl.u32 %v326, 7
  %v328 = vsub.s32 3, %v327
  %v329 = vrot.slane %v211, %v328
  %v330 = vmul.f32 %v324, %v329
  %v331 = vadd.f32 %v321, %v330
  %332 = vset.pattern.permute.xlu0 12
  %333 = vperm.xlu0 %332, %v15
  %v334 = vpop.permute.xlu0 %333
  %v336 = vlaneseq
  %v337 = vshrl.u32 %v336, 7
  %v338 = vsub.s32 4, %v337
  %v339 = vrot.slane %v211, %v338
  %v340 = vmul.f32 %v334, %v339
  %v341 = vadd.f32 %v331, %v340
  %342 = vset.pattern.permute.xlu0 13
  %343 = vperm.xlu0 %342, %v15
  %v344 = vpop.permute.xlu0 %343
  %v346 = vlaneseq
  %v347 = vshrl.u32 %v346, 7
  %v348 = vsub.s32 5, %v347
  %v349 = vrot.slane %v211, %v348
  %v350 = vmul.f32 %v344, %v349
  %v351 = vadd.f32 %v341, %v350
  %352 = vset.pattern.permute.xlu0 14
  %353 = vperm.xlu0 %352, %v15
  %v354 = vpop.permute.xlu0 %353
  %v356 = vlaneseq
  %v357 = vshrl.u32 %v356, 7
  %v358 = vsub.s32 6, %v357
  %v359 = vrot.slane %v211, %v358
  %v360 = vmul.f32 %v354, %v359
  %v361 = vadd.f32 %v351, %v360
  %362 = vset.pattern.permute.xlu0 15
  %363 = vperm.xlu0 %362, %v15
  %v364 = vpop.permute.xlu0 %363
  %v366 = vlaneseq
  %v367 = vshrl.u32 %v366, 7
  %v368 = vsub.s32 7, %v367
  %v369 = vrot.slane %v211, %v368
  %v370 = vmul.f32 %v364, %v369
  %v371 = vadd.f32 %v361, %v370
  %372 = vset.pattern.permute.xlu0 16
  %373 = vperm.xlu0 %372, %v15
  %v374 = vpop.permute.xlu0 %373
  %v376 = vadd.f32 %v371, %v374
  %377 = vst [vmem:[%s2] sm:$0xf] %v376
  // Predicated region
  $region10: #{nvidia_fit_forward.1} parent=0 // pred_check
    _
  $region11: #{nvidia_fit_forward.1} parent=0 // pred_check_branch
    %379 = sbr.rel (0) target = $region13
  $region12: #{nvidia_fit_forward.1} parent=0 // pred_region
    _
  $region13: #{nvidia_fit_forward.1} parent=0 // pred_fallthru
    _
  // Predicated region
  $region14: #{nvidia_fit_forward.1} parent=0 // pred_check
    _
  $region15: #{nvidia_fit_forward.1} parent=0 // pred_check_branch
    %381 = sbr.rel (0) target = $region17
  $region16: #{nvidia_fit_forward.1} parent=0 // pred_region
    _
  $region17: #{nvidia_fit_forward.1} parent=0 // pred_fallthru
    _

</llo_original>
